<compile_context>
chip_gen: v7x
topology: tpu7x:2x2x1
jax: 0.10.0
libtpu: 0.0.40
codegen_flags: <defaults>
</compile_context>

<pallas_src>
import functools
import numpy as np
import jax
import jax.numpy as jnp
from jax.experimental import pallas as pl
from jax.experimental.pallas import tpu as pltpu

EPS = 1e-8        # module's epsilon
_TINY = 1e-30     # guard for 1/max(|re|,|im|)


def _round_up(v, m):
    return (v + m - 1) // m * m


# ---------------- in-kernel elementwise math ----------------

def _atan_unit(r):
    # atan(r) for r in [0, 1]; Cephes atanf polynomial + tan(pi/8) range reduction.
    # The range reduction trades VPU ops for one EUP reciprocal (EUP has slack here).
    big = r > 0.4142135623730951
    r2 = jnp.where(big, (r - 1.0) * pl.reciprocal(r + 1.0, approx=True), r)
    z = r2 * r2
    p = ((((8.05374449538e-2 * z - 1.38776856032e-1) * z
           + 1.99777106478e-1) * z - 3.33329491539e-1) * z * r2 + r2)
    return jnp.where(big, p + np.float32(np.pi / 4.0), p)


def _atan2(y, x):
    # torch.atan2 semantics rebuilt from range reduction + polynomial atan.
    ax = jnp.abs(x)
    ay = jnp.abs(y)
    mx = jnp.maximum(ax, ay)
    mn = jnp.minimum(ax, ay)
    # exact reciprocal for the outer divide (it sets the atan argument directly);
    # the EUP is not the binding unit in this kernel, so the extra passes are free.
    r = mn * pl.reciprocal(jnp.maximum(mx, _TINY), approx=False)
    a = _atan_unit(r)
    a = jnp.where(ay > ax, np.float32(np.pi / 2.0) - a, a)
    a = jnp.where(x < 0.0, np.float32(np.pi) - a, a)
    # a >= 0 here; final sign(y) flip folded into a sign-bit XOR (cheaper than cmp+neg+select)
    sign_y = pltpu.bitcast(y, jnp.uint32) & np.uint32(0x80000000)
    return pltpu.bitcast(pltpu.bitcast(a, jnp.uint32) ^ sign_y, jnp.float32)


# ---------------- Pallas kernel ----------------

def _stft_kernel(k_pad, hop_pad, n_groups, tile_f,
                 wt_ref, ytm_ref, yth_ref, p_ref, d_ref):
    # wt_ref : (n_groups, 2*k_pad, hop_pad) bf16 -- windowed-DFT weights grouped by hop offset
    #          rows [0:k_pad) real, [k_pad:2*k_pad) imag
    # ytm_ref: (1, hop_pad, tile_f) bf16 -- hop-strided signal groups [f0, f0+tile_f)
    # yth_ref: (1, hop_pad, halo_w) bf16 -- halo groups [f0+tile_f, f0+tile_f+halo_w)
    s = jnp.concatenate([ytm_ref[0], yth_ref[0]], axis=1)     # (hop_pad, tile_f + halo_w)
    acc = jnp.full((2 * k_pad, tile_f), EPS, dtype=jnp.float32)
    for q in range(n_groups):                                  # static unroll, Q matmuls
        acc = acc + jnp.dot(wt_ref[q], s[:, q:q + tile_f],
                            preferred_element_type=jnp.float32)
    real = acc[:k_pad, :]
    imag = acc[k_pad:, :]
    d_ref[0] = jnp.sqrt(real * real + imag * imag)             # magnitude D
    p_ref[0] = _atan2(imag, real)                              # phase P


# ---------------- planning + input construction ----------------

def _plan(x_shape, kernel_size, stride):
    B, _, T = (int(s) for s in x_shape)
    n_fft, hop = int(kernel_size), int(stride)
    n_freq = n_fft // 2 + 1
    pad = n_fft // 2
    if pad >= T:
        raise ValueError(f"reflect padding needs T > n_fft//2 (T={T}, n_fft={n_fft})")
    Tp = T + 2 * pad
    n_frames = 1 + (Tp - n_fft) // hop
    Q = -(-n_fft // hop)                      # hop-groups per frame
    hop_pad = _round_up(hop, 16)              # bf16 sublane packing
    k_pad = _round_up(n_freq, 8)

    # frames-per-step tile: as large as possible (<=512), bounded padding waste, and at
    # least 2 parallel grid tiles when B == 1 so both v7x TensorCores get work.
    need_tiles = 2 if B == 1 else 1
    tile_f = 128
    for t in (512, 256):
        f_pad_t = _round_up(n_frames, t)
        if f_pad_t // t < need_tiles:
            continue
        if (f_pad_t - n_frames) * 3 <= f_pad_t:   # <= ~33% padded-frame waste
            tile_f = t
            break
    f_pad = _round_up(n_frames, tile_f)

    halo_w = 128 if Q - 1 <= 128 else tile_f
    if Q - 1 > halo_w:
        # TODO(synk): stride < kernel_size/512 (extreme overlap) needs a wider halo /
        # different framing path; not implemented.
        raise NotImplementedError("stride too small relative to kernel_size for this kernel")
    G_pad = f_pad + halo_w

    return dict(B=B, T=T, n_fft=n_fft, hop=hop, n_freq=n_freq, pad=pad, Tp=Tp,
                n_frames=n_frames, Q=Q, hop_pad=hop_pad, k_pad=k_pad,
                tile_f=tile_f, f_pad=f_pad, halo_w=halo_w, G_pad=G_pad)


def _build_inputs(x, p):
    """Reflect-pad, lay the signal out hop-strided, build grouped bf16 DFT weights."""
    xs = jnp.squeeze(x, axis=1).astype(jnp.float32)                     # (B, T)
    xp = jnp.pad(xs, ((0, 0), (p["pad"], p["pad"])), mode="reflect")    # center=True
    total = p["G_pad"] * p["hop"]
    if total >= p["Tp"]:
        xp_ext = jnp.pad(xp, ((0, 0), (0, total - p["Tp"])))
    else:
        xp_ext = xp[:, :total]
    # hop-strided group layout: yt[b, r, g] = xp[b, g*hop + r]  (no frame-matrix blowup)
    yt = jnp.transpose(xp_ext.reshape(p["B"], p["G_pad"], p["hop"]), (0, 2, 1))
    if p["hop_pad"] > p["hop"]:
        yt = jnp.pad(yt, ((0, 0), (0, p["hop_pad"] - p["hop"]), (0, 0)))
    yt = yt.astype(jnp.bfloat16)

    # windowed DFT weights (periodic Hann = torch.hann_window default), grouped by hop offset:
    # wt[q, k, r] = win[q*hop+r] * {cos, -sin}(2*pi*k*(q*hop+r)/n_fft)
    n = np.arange(p["n_fft"])
    k = np.arange(p["n_freq"])
    win = 0.5 - 0.5 * np.cos(2.0 * np.pi * n / p["n_fft"])
    ang = 2.0 * np.pi * np.outer(k, n) / p["n_fft"]
    wr = (win[None, :] * np.cos(ang)).astype(np.float32)
    wi = (-win[None, :] * np.sin(ang)).astype(np.float32)
    wt = np.zeros((p["Q"], 2 * p["k_pad"], p["hop_pad"]), np.float32)
    for q in range(p["Q"]):
        lo = q * p["hop"]
        w = min(p["n_fft"], lo + p["hop"]) - lo
        wt[q, :p["n_freq"], :w] = wr[:, lo:lo + w]
        wt[q, p["k_pad"]:p["k_pad"] + p["n_freq"], :w] = wi[:, lo:lo + w]
    wt = jnp.asarray(wt, dtype=jnp.bfloat16)
    return wt, yt


# ---------------- wrapper ----------------

def stft_forward(x, kernel_size, stride):
    """x: (B, 1, T) float32.  Returns (P, D), each (B, n_freq, n_frames) float32."""
    # TODO(synk): dB=True path calls self.amplitude_to_db which is not defined in the
    # reference module; only the dB=False path is implemented.
    p = _plan(x.shape, kernel_size, stride)
    wt, yt = _build_inputs(x, p)
    B, k_pad, tile_f = p["B"], p["k_pad"], p["tile_f"]
    hop_pad, halo_w, f_pad, Q = p["hop_pad"], p["halo_w"], p["f_pad"], p["Q"]
    halo_stride = tile_f // halo_w            # halo block index step per frame tile

    # VMEM budget from the actual (double-buffered) block sizes + epilogue intermediates.
    w_bytes = Q * 2 * k_pad * hop_pad * 2
    in_bytes = hop_pad * (tile_f + halo_w) * 2
    out_bytes = 2 * (k_pad * tile_f * 4)
    interm = 16 * k_pad * tile_f * 4 + 2 * hop_pad * (tile_f + halo_w) * 2
    need = 2 * (w_bytes + in_bytes + out_bytes) + interm + (2 << 20)
    vmem_limit = int(min(96 << 20, max(32 << 20, int(1.5 * need))))
    # TODO(synk): for n_fft >= 4096 the grid-invariant weight block (~2*n_fft^2 bytes,
    # double-buffered) approaches v7x's 64 MiB VMEM; split frequency rows over a 3rd grid axis.

    grid = (B, f_pad // tile_f)
    kernel = functools.partial(_stft_kernel, k_pad, hop_pad, Q, tile_f)
    p_pad, d_pad = pl.pallas_call(
        kernel,
        out_shape=(jax.ShapeDtypeStruct((B, k_pad, f_pad), jnp.float32),
                   jax.ShapeDtypeStruct((B, k_pad, f_pad), jnp.float32)),
        grid=grid,
        in_specs=[
            pl.BlockSpec((Q, 2 * k_pad, hop_pad), lambda b, f: (0, 0, 0)),   # invariant weights
            pl.BlockSpec((1, hop_pad, tile_f), lambda b, f: (b, 0, f)),      # main signal groups
            pl.BlockSpec((1, hop_pad, halo_w),
                         lambda b, f: (b, 0, (f + 1) * halo_stride)),        # halo groups
        ],
        out_specs=(
            pl.BlockSpec((1, k_pad, tile_f), lambda b, f: (b, 0, f)),
            pl.BlockSpec((1, k_pad, tile_f), lambda b, f: (b, 0, f)),
        ),
        compiler_params=pltpu.CompilerParams(
            dimension_semantics=("parallel", "parallel"),
            vmem_limit_bytes=vmem_limit),
    )(wt, yt, yt)

    # already lane-dense (B, freq, frames) -- just drop the padding
    P = p_pad[:, :p["n_freq"], :p["n_frames"]]
    D = d_pad[:, :p["n_freq"], :p["n_frames"]]
    return P, D


if __name__ == "__main__":
    key = jax.random.PRNGKey(0)
    B, T = 2, 64
    kernel_size, stride = 16, 4                    # STFT(kernel_size=16, stride=4)
    x = jax.random.normal(key, (B, 1, T), dtype=jnp.float32)

    stft_fn = jax.jit(stft_forward, static_argnums=(1, 2))
    P, D = stft_fn(x, kernel_size, stride)
    jax.block_until_ready((P, D))

    # ---- pure NumPy reference: direct framing + windowed DFT on the same
    # bf16-quantized signal / weights the kernel consumes ----
    n_fft, hop = kernel_size, stride
    n_freq = n_fft // 2 + 1
    pad = n_fft // 2
    q16 = lambda a: np.asarray(jnp.asarray(a, jnp.float32).astype(jnp.bfloat16)
                               .astype(jnp.float32))
    xs = np.asarray(jnp.squeeze(x, 1), np.float32)
    xp = np.pad(xs, ((0, 0), (pad, pad)), mode="reflect")
    xpq = q16(xp)
    n_frames = 1 + (xp.shape[1] - n_fft) // hop
    idx = hop * np.arange(n_frames)[:, None] + np.arange(n_fft)[None, :]
    frames = xpq[:, idx]                                   # (B, n_frames, n_fft)
    n = np.arange(n_fft)
    k = np.arange(n_freq)
    win = 0.5 - 0.5 * np.cos(2.0 * np.pi * n / n_fft)
    ang = 2.0 * np.pi * np.outer(k, n) / n_fft
    wr = q16(win[None, :] * np.cos(ang))
    wi = q16(-win[None, :] * np.sin(ang))
    real = np.einsum("kn,bfn->bkf", wr, frames) + EPS
    imag = np.einsum("kn,bfn->bkf", wi, frames) + EPS
    P_ref = np.arctan2(imag, real)
    D_ref = np.sqrt(real * real + imag * imag)

    np.testing.assert_allclose(np.asarray(D), D_ref, rtol=2e-3, atol=2e-3)

    P_np = np.asarray(P)
    assert np.all(np.isfinite(P_np)), "non-finite phase values"
    # Phase is an angle: compare modulo 2*pi, and only where the magnitude is not ~zero
    # (a both-components-near-zero bin has no well-defined phase).
    dphi = (P_np - P_ref + np.pi) % (2.0 * np.pi) - np.pi
    sig = D_ref > 1e-3
    max_err = float(np.max(np.abs(np.where(sig, dphi, 0.0))))
    if max_err > 2e-2:
        raise AssertionError(f"phase mismatch: max wrapped error {max_err}")

    print("KERNEL_OK")
</pallas_src>

<mosaic_0001>
module attributes {stable_mosaic.version = 11 : i64} {
  func.func @_stft_kernel(%arg0: i32, %arg1: i32, %arg2: memref<4x32x16xbf16, #tpu.memory_space<vmem>>, %arg3: memref<1x16x128xbf16, #tpu.memory_space<vmem>>, %arg4: memref<1x16x128xbf16, #tpu.memory_space<vmem>>, %arg5: memref<1x16x128xf32, #tpu.memory_space<vmem>>, %arg6: memref<1x16x128xf32, #tpu.memory_space<vmem>>) attributes {dimension_semantics = [#tpu.dimension_semantics<parallel>, #tpu.dimension_semantics<parallel>], iteration_bounds = array<i64: 2, 1>, scalar_prefetch = 0 : i64, scratch_operands = 0 : i64, tpu.core_type = #tpu.core_type<tc>, window_params = [{pipeline_mode = #tpu.pipeline_mode<synchronous>, transform_indices = @transform_0, window_bounds = array<i64: 4, 32, 16>}, {transform_indices = @transform_1, window_bounds = array<i64: 1, 16, 128>}, {transform_indices = @transform_2, window_bounds = array<i64: 1, 16, 128>}, {transform_indices = @transform_3, window_bounds = array<i64: 1, 16, 128>}, {transform_indices = @transform_4, window_bounds = array<i64: 1, 16, 128>}]} {
    %c0 = arith.constant 0 : index
    %c0_0 = arith.constant 0 : index
    %c0_1 = arith.constant 0 : index
    %0 = vector.load %arg3[%c0, %c0_0, %c0_1] : memref<1x16x128xbf16, #tpu.memory_space<vmem>>, vector<1x16x128xbf16>
    %1 = vector.shape_cast %0 : vector<1x16x128xbf16> to vector<16x128xbf16>
    %c0_2 = arith.constant 0 : index
    %c0_3 = arith.constant 0 : index
    %c0_4 = arith.constant 0 : index
    %2 = vector.load %arg4[%c0_2, %c0_3, %c0_4] : memref<1x16x128xbf16, #tpu.memory_space<vmem>>, vector<1x16x128xbf16>
    %3 = vector.shape_cast %2 : vector<1x16x128xbf16> to vector<16x128xbf16>
    %4 = tpu.concatenate %1, %3 in 1 : vector<16x128xbf16>, vector<16x128xbf16> -> vector<16x256xbf16>
    %cst = arith.constant 9.99999993E-9 : f32
    %5 = vector.broadcast %cst : f32 to vector<32x128xf32>
    %c0_5 = arith.constant 0 : index
    %c0_6 = arith.constant 0 : index
    %c0_7 = arith.constant 0 : index
    %6 = vector.load %arg2[%c0_5, %c0_6, %c0_7] : memref<4x32x16xbf16, #tpu.memory_space<vmem>>, vector<1x32x16xbf16>
    %7 = vector.shape_cast %6 : vector<1x32x16xbf16> to vector<32x16xbf16>
    %8 = vector.extract_strided_slice %4 {offsets = [0, 0], sizes = [16, 128], strides = [1, 1]} : vector<16x256xbf16> to vector<16x128xbf16>
    %cst_8 = arith.constant dense<0.000000e+00> : vector<32x128xf32>
    %9 = tpu.matmul %7, %8, %cst_8 {dimension_numbers = #tpu.dot_dimension_numbers<[1], [0], [0], [1], [0, 0, 1, 1], [], []>} : vector<32x16xbf16>, vector<16x128xbf16>, vector<32x128xf32> -> vector<32x128xf32>
    %10 = arith.addf %5, %9 : vector<32x128xf32>
    %c1 = arith.constant 1 : index
    %c0_9 = arith.constant 0 : index
    %c0_10 = arith.constant 0 : index
    %11 = vector.load %arg2[%c1, %c0_9, %c0_10] : memref<4x32x16xbf16, #tpu.memory_space<vmem>>, vector<1x32x16xbf16>
    %12 = vector.shape_cast %11 : vector<1x32x16xbf16> to vector<32x16xbf16>
    %13 = vector.extract_strided_slice %4 {offsets = [0, 1], sizes = [16, 128], strides = [1, 1]} : vector<16x256xbf16> to vector<16x128xbf16>
    %cst_11 = arith.constant dense<0.000000e+00> : vector<32x128xf32>
    %14 = tpu.matmul %12, %13, %cst_11 {dimension_numbers = #tpu.dot_dimension_numbers<[1], [0], [0], [1], [0, 0, 1, 1], [], []>} : vector<32x16xbf16>, vector<16x128xbf16>, vector<32x128xf32> -> vector<32x128xf32>
    %15 = arith.addf %10, %14 : vector<32x128xf32>
    %c2 = arith.constant 2 : index
    %c0_12 = arith.constant 0 : index
    %c0_13 = arith.constant 0 : index
    %16 = vector.load %arg2[%c2, %c0_12, %c0_13] : memref<4x32x16xbf16, #tpu.memory_space<vmem>>, vector<1x32x16xbf16>
    %17 = vector.shape_cast %16 : vector<1x32x16xbf16> to vector<32x16xbf16>
    %18 = vector.extract_strided_slice %4 {offsets = [0, 2], sizes = [16, 128], strides = [1, 1]} : vector<16x256xbf16> to vector<16x128xbf16>
    %cst_14 = arith.constant dense<0.000000e+00> : vector<32x128xf32>
    %19 = tpu.matmul %17, %18, %cst_14 {dimension_numbers = #tpu.dot_dimension_numbers<[1], [0], [0], [1], [0, 0, 1, 1], [], []>} : vector<32x16xbf16>, vector<16x128xbf16>, vector<32x128xf32> -> vector<32x128xf32>
    %20 = arith.addf %15, %19 : vector<32x128xf32>
    %c3 = arith.constant 3 : index
    %c0_15 = arith.constant 0 : index
    %c0_16 = arith.constant 0 : index
    %21 = vector.load %arg2[%c3, %c0_15, %c0_16] : memref<4x32x16xbf16, #tpu.memory_space<vmem>>, vector<1x32x16xbf16>
    %22 = vector.shape_cast %21 : vector<1x32x16xbf16> to vector<32x16xbf16>
    %23 = vector.extract_strided_slice %4 {offsets = [0, 3], sizes = [16, 128], strides = [1, 1]} : vector<16x256xbf16> to vector<16x128xbf16>
    %cst_17 = arith.constant dense<0.000000e+00> : vector<32x128xf32>
    %24 = tpu.matmul %22, %23, %cst_17 {dimension_numbers = #tpu.dot_dimension_numbers<[1], [0], [0], [1], [0, 0, 1, 1], [], []>} : vector<32x16xbf16>, vector<16x128xbf16>, vector<32x128xf32> -> vector<32x128xf32>
    %25 = arith.addf %20, %24 : vector<32x128xf32>
    %26 = vector.extract_strided_slice %25 {offsets = [0, 0], sizes = [16, 128], strides = [1, 1]} : vector<32x128xf32> to vector<16x128xf32>
    %27 = vector.extract_strided_slice %25 {offsets = [16, 0], sizes = [16, 128], strides = [1, 1]} : vector<32x128xf32> to vector<16x128xf32>
    %28 = arith.mulf %26, %26 : vector<16x128xf32>
    %29 = arith.mulf %27, %27 : vector<16x128xf32>
    %30 = arith.addf %28, %29 : vector<16x128xf32>
    %31 = math.sqrt %30 : vector<16x128xf32>
    %c0_18 = arith.constant 0 : index
    %c0_19 = arith.constant 0 : index
    %c0_20 = arith.constant 0 : index
    %32 = vector.load %arg6[%c0_18, %c0_19, %c0_20] : memref<1x16x128xf32, #tpu.memory_space<vmem>>, vector<1x16x128xf32>
    %33 = vector.shape_cast %32 : vector<1x16x128xf32> to vector<16x128xf32>
    %34 = vector.shape_cast %31 : vector<16x128xf32> to vector<1x16x128xf32>
    tpu.vector_store %arg6[%c0_18, %c0_19, %c0_20], %34 {strides = array<i32>} : memref<1x16x128xf32, #tpu.memory_space<vmem>>, vector<1x16x128xf32>,
    %35 = math.absf %26 : vector<16x128xf32>
    %36 = math.absf %27 : vector<16x128xf32>
    %37 = arith.maximumf %35, %36 : vector<16x128xf32>
    %38 = arith.minimumf %35, %36 : vector<16x128xf32>
    %cst_21 = arith.constant 1.000000e-30 : f32
    %39 = vector.broadcast %cst_21 : f32 to vector<16x128xf32>
    %40 = arith.maximumf %37, %39 : vector<16x128xf32>
    %41 = tpu.reciprocal %40 : vector<16x128xf32> -> vector<16x128xf32>
    %42 = arith.mulf %38, %41 : vector<16x128xf32>
    %cst_22 = arith.constant 0.414213568 : f32
    %43 = vector.broadcast %cst_22 : f32 to vector<16x128xf32>
    %44 = arith.cmpf ogt, %42, %43 : vector<16x128xf32>
    %cst_23 = arith.constant 1.000000e+00 : f32
    %45 = vector.broadcast %cst_23 : f32 to vector<16x128xf32>
    %46 = arith.subf %42, %45 : vector<16x128xf32>
    %cst_24 = arith.constant 1.000000e+00 : f32
    %47 = vector.broadcast %cst_24 : f32 to vector<16x128xf32>
    %48 = arith.addf %42, %47 : vector<16x128xf32>
    %49 = tpu.reciprocal %48 {approx = true} : vector<16x128xf32> -> vector<16x128xf32>
    %50 = arith.mulf %46, %49 : vector<16x128xf32>
    %51 = arith.select %44, %50, %42 : vector<16x128xi1>, vector<16x128xf32>
    %52 = arith.mulf %51, %51 : vector<16x128xf32>
    %cst_25 = arith.constant 0.0805374458 : f32
    %53 = vector.broadcast %cst_25 : f32 to vector<16x128xf32>
    %54 = arith.mulf %53, %52 : vector<16x128xf32>
    %cst_26 = arith.constant 0.138776854 : f32
    %55 = vector.broadcast %cst_26 : f32 to vector<16x128xf32>
    %56 = arith.subf %54, %55 : vector<16x128xf32>
    %57 = arith.mulf %56, %52 : vector<16x128xf32>
    %cst_27 = arith.constant 0.199777111 : f32
    %58 = vector.broadcast %cst_27 : f32 to vector<16x128xf32>
    %59 = arith.addf %57, %58 : vector<16x128xf32>
    %60 = arith.mulf %59, %52 : vector<16x128xf32>
    %cst_28 = arith.constant 0.333329499 : f32
    %61 = vector.broadcast %cst_28 : f32 to vector<16x128xf32>
    %62 = arith.subf %60, %61 : vector<16x128xf32>
    %63 = arith.mulf %62, %52 : vector<16x128xf32>
    %64 = arith.mulf %63, %51 : vector<16x128xf32>
    %65 = arith.addf %64, %51 : vector<16x128xf32>
    %cst_29 = arith.constant 0.785398185 : f32
    %66 = vector.broadcast %cst_29 : f32 to vector<16x128xf32>
    %67 = arith.addf %65, %66 : vector<16x128xf32>
    %68 = arith.select %44, %67, %65 : vector<16x128xi1>, vector<16x128xf32>
    %69 = arith.cmpf ogt, %36, %35 : vector<16x128xf32>
    %cst_30 = arith.constant 1.57079637 : f32
    %70 = vector.broadcast %cst_30 : f32 to vector<16x128xf32>
    %71 = arith.subf %70, %68 : vector<16x128xf32>
    %72 = arith.select %69, %71, %68 : vector<16x128xi1>, vector<16x128xf32>
    %cst_31 = arith.constant 0.000000e+00 : f32
    %73 = vector.broadcast %cst_31 : f32 to vector<16x128xf32>
    %74 = arith.cmpf olt, %26, %73 : vector<16x128xf32>
    %cst_32 = arith.constant 3.14159274 : f32
    %75 = vector.broadcast %cst_32 : f32 to vector<16x128xf32>
    %76 = arith.subf %75, %72 : vector<16x128xf32>
    %77 = arith.select %74, %76, %72 : vector<16x128xi1>, vector<16x128xf32>
    %78 = tpu.bitcast %27 : vector<16x128xf32> -> vector<16x128xi32>
    %c-2147483648_i32 = arith.constant -2147483648 : i32
    %79 = vector.broadcast %c-2147483648_i32 : i32 to vector<16x128xi32>
    %80 = arith.andi %78, %79 : vector<16x128xi32>
    %81 = tpu.bitcast %77 : vector<16x128xf32> -> vector<16x128xi32>
    %82 = arith.xori %81, %80 : vector<16x128xi32>
    %83 = tpu.bitcast %82 : vector<16x128xi32> -> vector<16x128xf32>
    %c0_33 = arith.constant 0 : index
    %c0_34 = arith.constant 0 : index
    %c0_35 = arith.constant 0 : index
    %84 = vector.load %arg5[%c0_33, %c0_34, %c0_35] : memref<1x16x128xf32, #tpu.memory_space<vmem>>, vector<1x16x128xf32>
    %85 = vector.shape_cast %84 : vector<1x16x128xf32> to vector<16x128xf32>
    %86 = vector.shape_cast %83 : vector<16x128xf32> to vector<1x16x128xf32>
    tpu.vector_store %arg5[%c0_33, %c0_34, %c0_35], %86 {strides = array<i32>} : memref<1x16x128xf32, #tpu.memory_space<vmem>>, vector<1x16x128xf32>,
    return
  }
  func.func @transform_0(%arg0: i32, %arg1: i32) -> (i32, i32, i32) {
    %c0_i32 = arith.constant 0 : i32
    %c0_i32_0 = arith.constant 0 : i32
    %c0_i32_1 = arith.constant 0 : i32
    %c0_i32_2 = arith.constant 0 : i32
    return %c0_i32, %c0_i32_0, %c0_i32_1 : i32, i32, i32
  }
  func.func @transform_1(%arg0: i32, %arg1: i32) -> (i32, i32, i32) {
    %c0_i32 = arith.constant 0 : i32
    %c0_i32_0 = arith.constant 0 : i32
    return %arg0, %c0_i32, %arg1 : i32, i32, i32
  }
  func.func @transform_2(%arg0: i32, %arg1: i32) -> (i32, i32, i32) {
    %c1_i32 = arith.constant 1 : i32
    %0 = arith.addi %arg1, %c1_i32 : i32
    %c1_i32_0 = arith.constant 1 : i32
    %1 = arith.muli %0, %c1_i32_0 : i32
    %c0_i32 = arith.constant 0 : i32
    %c0_i32_1 = arith.constant 0 : i32
    return %arg0, %c0_i32, %1 : i32, i32, i32
  }
  func.func @transform_3(%arg0: i32, %arg1: i32) -> (i32, i32, i32) {
    %c0_i32 = arith.constant 0 : i32
    %c0_i32_0 = arith.constant 0 : i32
    return %arg0, %c0_i32, %arg1 : i32, i32, i32
  }
  func.func @transform_4(%arg0: i32, %arg1: i32) -> (i32, i32, i32) {
    %c0_i32 = arith.constant 0 : i32
    %c0_i32_0 = arith.constant 0 : i32
    return %arg0, %c0_i32, %arg1 : i32, i32, i32
  }
}

</mosaic_0001>

<llo_original>
// kernel: stft_forward.1
$region0: #{stft_forward.1}
  #allocation0 [shape = 'u32[]', space=smem, size = 0x4, offset = 0x4, fixed_abs, tag = 'smem constant byte address 0x4 - core index']
  #allocation1 [shape = 'u32[144,128]{1,0:T(1,128)}', space=vmem, size = 0x12000, scoped, tag = 'internal scratch']
  %s0 = inlined_call_operand.vmem [shape: bf16[4,32,16], index: 0, kind: input, shape index: {}]
  %s1 = inlined_call_operand.vmem [shape: bf16[2,16,256], index: 1, kind: input, shape index: {}, may-alias: {1,2}]
  %s2 = inlined_call_operand.vmem [shape: bf16[2,16,256], index: 2, kind: input, shape index: {}, may-alias: {1,2}]
  %s3 = inlined_call_operand.vmem [shape: f32[2,16,128], index: 3, kind: output, shape index: {0}]
  %s4 = inlined_call_operand.vmem [shape: f32[2,16,128], index: 4, kind: output, shape index: {1}]
  %5 = xla_tuple %s3, %s4
  %s6 = sld [smem:[#allocation0]]
  $region135: #{stft_forward.1} parent=0
    _
  %s8 = ssub.s32 1, %s6
  %s9 = scalar_select 0, %s8, %s6
  $region1: #{stft_forward.1} parent=0
    #allocation2 [shape = 'u8[8192]{0}', space=vmem, size = 0x2000, scoped, tag = 'input window, operand 1']
    #allocation3 [shape = 'u8[8192]{0}', space=vmem, size = 0x2000, scoped, tag = 'input window, operand 2']
    loop: start=0, step=1, limit=4
    $region2: #{stft_forward.1} parent=1 // loop_pre_header
      _
    $region3: #{stft_forward.1} parent=1 // loop_header
      %s11 = sphi 0, %s15
      %p12 = scmp.ge.s32.totalorder %s11, 4
      %s18 = sphi 0, %s30
      %s19 = sphi 0, %s26
      %s20 = sphi 0, %s18
      %s21 = sphi 0, %s19
      %s22 = sphi 0, %s20
      %s23 = sphi 0, %s21
      %s31 = sphi 0, %s31
      %s33 = sphi 0, %s31
      %s34 = sphi 0, %s33
      %s48 = sphi 0, %s34
      %s56 = sphi 0, %s58
      %s59 = sphi 0, %s56
      %s60 = sphi 0, %s59
      %s76 = sphi 0, %s60
      %s86 = sphi 0, %s88
      %s89 = sphi 0, %s86
      %s90 = sphi 0, %s89
      %s106 = sphi 0, %s90
      %s114 = sphi 0, %s116
      %s117 = sphi 0, %s114
      %s118 = sphi 0, %s117
      %s134 = sphi 0, %s118
      %s142 = sphi 0, %s144
      %s145 = sphi 0, %s142
      %s146 = sphi 0, %s145
      %s162 = sphi 0, %s146
    $region4: #{stft_forward.1} parent=1 // loop_header_branch
      %14 = sbr.rel (%p12) target = $region8
    $region5: #{stft_forward.1} parent=1 // loop_body
      %s16 = ssub.s32 %s11, 1
      %s17 = ssub.s32 %s11, 2
      %s24 = sadd.s32 1, %s19
      %p25 = scmp.ge.s32.totalorder %s24, 1
      %s26 = scalar_select %p25, 0, %s24
      %s27 = sadd.s32 1, %s18
      %s28 = scalar_select %p25, %s27, %s18
      %p29 = scmp.ge.s32.totalorder %s28, 2
      %s30 = scalar_select %p29, 0, %s28
      %s32 = sadd.s32 %s31, 1
      %p35 = scmp.eq.s32.totalorder %s11, 1
      %p36 = scmp.ne.s32.totalorder %s31, %s33
      %p37 = scmp.eq.s32.totalorder %s11, 0
      %p38 = por %p36, %p37
      %p39 = scmp.ne.s32.totalorder %s31, %s33
      %p40 = scmp.eq.s32.totalorder %s16, 1
      %p41 = por %p39, %p40
      %p42 = scmp.ne.s32.totalorder %s33, %s34
      %p43 = scmp.eq.s32.totalorder %s16, 0
      %p44 = por %p42, %p43
      %p45 = scmp.ne.s32.totalorder %s33, %s34
      %p46 = scmp.eq.s32.totalorder %s17, 1
      %p47 = por %p45, %p46
      %p49 = scmp.ne.s32.totalorder %s34, %s48
      %p50 = scmp.eq.s32.totalorder %s17, 0
      %p51 = por %p49, %p50
      %s52 = ssub.s32 %s18, %s30
      %s53 = ssub.s32 %s19, %s26
      %s54 = sor.u32 %s52, %s53
      %p55 = scmp.eq.s32.totalorder %s54, 0
      %s57 = sadd.s32 %s56, 1
      %s58 = scalar_select %p55, %s56, %s57
      %p61 = pneg %p55
      %p62 = scmp.eq.s32.totalorder %s11, 1
      %p63 = por %p61, %p62
      %p64 = scmp.ne.s32.totalorder %s56, %s59
      %p65 = scmp.eq.s32.totalorder %s11, 0
      %p66 = por %p64, %p65
      %p67 = scmp.ne.s32.totalorder %s56, %s59
      %p68 = scmp.eq.s32.totalorder %s16, 1
      %p69 = por %p67, %p68
      %p70 = scmp.ne.s32.totalorder %s59, %s60
      %p71 = scmp.eq.s32.totalorder %s16, 0
      %p72 = por %p70, %p71
      %p73 = scmp.ne.s32.totalorder %s59, %s60
      %p74 = scmp.eq.s32.totalorder %s17, 1
      %p75 = por %p73, %p74
      %p77 = scmp.ne.s32.totalorder %s60, %s76
      %p78 = scmp.eq.s32.totalorder %s17, 0
      %p79 = por %p77, %p78
      %s80 = sadd.s32 %s19, 1
      %s81 = sadd.s32 %s26, 1
      %s82 = ssub.s32 %s18, %s30
      %s83 = ssub.s32 %s80, %s81
      %s84 = sor.u32 %s82, %s83
      %p85 = scmp.eq.s32.totalorder %s84, 0
      %s87 = sadd.s32 %s86, 1
      %s88 = scalar_select %p85, %s86, %s87
      %p91 = pneg %p85
      %p92 = scmp.eq.s32.totalorder %s11, 1
      %p93 = por %p91, %p92
      %p94 = scmp.ne.s32.totalorder %s86, %s89
      %p95 = scmp.eq.s32.totalorder %s11, 0
      %p96 = por %p94, %p95
      %p97 = scmp.ne.s32.totalorder %s86, %s89
      %p98 = scmp.eq.s32.totalorder %s16, 1
      %p99 = por %p97, %p98
      %p100 = scmp.ne.s32.totalorder %s89, %s90
      %p101 = scmp.eq.s32.totalorder %s16, 0
      %p102 = por %p100, %p101
      %p103 = scmp.ne.s32.totalorder %s89, %s90
      %p104 = scmp.eq.s32.totalorder %s17, 1
      %p105 = por %p103, %p104
      %p107 = scmp.ne.s32.totalorder %s90, %s106
      %p108 = scmp.eq.s32.totalorder %s17, 0
      %p109 = por %p107, %p108
      %s110 = ssub.s32 %s18, %s30
      %s111 = ssub.s32 %s19, %s26
      %s112 = sor.u32 %s110, %s111
      %p113 = scmp.eq.s32.totalorder %s112, 0
      %s115 = sadd.s32 %s114, 1
      %s116 = scalar_select %p113, %s114, %s115
      %p119 = pneg %p113
      %p120 = scmp.eq.s32.totalorder %s11, 1
      %p121 = por %p119, %p120
      %p122 = scmp.ne.s32.totalorder %s114, %s117
      %p123 = scmp.eq.s32.totalorder %s11, 0
      %p124 = por %p122, %p123
      %p125 = scmp.ne.s32.totalorder %s114, %s117
      %p126 = scmp.eq.s32.totalorder %s16, 1
      %p127 = por %p125, %p126
      %p128 = scmp.ne.s32.totalorder %s117, %s118
      %p129 = scmp.eq.s32.totalorder %s16, 0
      %p130 = por %p128, %p129
      %p131 = scmp.ne.s32.totalorder %s117, %s118
      %p132 = scmp.eq.s32.totalorder %s17, 1
      %p133 = por %p131, %p132
      %p135 = scmp.ne.s32.totalorder %s118, %s134
      %p136 = scmp.eq.s32.totalorder %s17, 0
      %p137 = por %p135, %p136
      %s138 = ssub.s32 %s18, %s30
      %s139 = ssub.s32 %s19, %s26
      %s140 = sor.u32 %s138, %s139
      %p141 = scmp.eq.s32.totalorder %s140, 0
      %s143 = sadd.s32 %s142, 1
      %s144 = scalar_select %p141, %s142, %s143
      %p147 = pneg %p141
      %p148 = scmp.eq.s32.totalorder %s11, 1
      %p149 = por %p147, %p148
      %p150 = scmp.ne.s32.totalorder %s142, %s145
      %p151 = scmp.eq.s32.totalorder %s11, 0
      %p152 = por %p150, %p151
      %p153 = scmp.ne.s32.totalorder %s142, %s145
      %p154 = scmp.eq.s32.totalorder %s16, 1
      %p155 = por %p153, %p154
      %p156 = scmp.ne.s32.totalorder %s145, %s146
      %p157 = scmp.eq.s32.totalorder %s16, 0
      %p158 = por %p156, %p157
      %p159 = scmp.ne.s32.totalorder %s145, %s146
      %p160 = scmp.eq.s32.totalorder %s17, 1
      %p161 = por %p159, %p160
      %p163 = scmp.ne.s32.totalorder %s146, %s162
      %p164 = scmp.eq.s32.totalorder %s17, 0
      %p165 = por %p163, %p164
      %p166 = scmp.le.s32.totalorder 1, %s11
      %p167 = scmp.lt.s32.totalorder %s11, 3
      %p168 = pnand %p166, %p167
      %p169 = pneg %p168
      // Predicated region
      $region9: #{stft_forward.1} parent=5 // pred_check
        _
      $region10: #{stft_forward.1} parent=5 // pred_check_branch
        %171 = sbr.rel (%p168) target = $region12
      $region11: #{stft_forward.1} parent=5 // pred_region
        %s172 = ssub.s32 %s11, 1
        // Predicated region
        $region13: #{stft_forward.1} parent=11 // pred_check
          %p173 = pneg %p44
        $region14: #{stft_forward.1} parent=11 // pred_check_branch
          %175 = sbr.rel (%p173) target = $region16
        $region15: #{stft_forward.1} parent=11 // pred_region
          _
        $region16: #{stft_forward.1} parent=11 // pred_fallthru
          _
      $region12: #{stft_forward.1} parent=5 // pred_fallthru
        _
      %p176 = scmp.lt.s32.totalorder %s11, 2
      // Predicated region
      $region17: #{stft_forward.1} parent=5 // pred_check
        %p177 = pneg %p176
      $region18: #{stft_forward.1} parent=5 // pred_check_branch
        %179 = sbr.rel (%p177) target = $region20
      $region19: #{stft_forward.1} parent=5 // pred_region
        // Predicated region
        $region21: #{stft_forward.1} parent=19 // pred_check
          %p180 = pneg %p66
        $region22: #{stft_forward.1} parent=19 // pred_check_branch
          %182 = sbr.rel (%p180) target = $region24
        $region23: #{stft_forward.1} parent=19 // pred_region
          %s183 = sand.u32 %s56, 1
          %s184 = sand.u32 %s56, 1
          %s185 = smul.addr %s184, 8
          %s186 = scalar_lea.vmem [#allocation2], %s185
          %s187 = smul.addr %s18, 4
          %s188 = sadd.s32 %s19, %s187
          %s189 = smul.addr %s188, 4
          %s190 = scalar_lea.vmem %s1, %s189
          // Predicated region
          $region25: #{stft_forward.1} parent=23 // pred_check
            _
          $region26: #{stft_forward.1} parent=23 // pred_check_branch
            %192 = sbr.rel (0) target = $region28
          $region27: #{stft_forward.1} parent=23 // pred_region
            // Predicated region
            $region29: #{stft_forward.1} parent=27 // pred_check
              _
            $region30: #{stft_forward.1} parent=27 // pred_check_branch
              %194 = sbr.rel target = $region32
            $region31: #{stft_forward.1} parent=27 // pred_region
              // Predicated region
              $region44: #{stft_forward.1} parent=31 // pred_check
                _
              $region45: #{stft_forward.1} parent=31 // pred_check_branch
                %211 = sbr.rel (0) target = $region47
              $region46: #{stft_forward.1} parent=31 // pred_region
                loop: start=0, step=1, limit=1
                $region48: #{stft_forward.1} parent=46 // loop_pre_header
                  _
                $region49: #{stft_forward.1} parent=46 // loop_header
                  %s213 = sphi 0, %s217
                  %p214 = scmp.ge.s32.totalorder %s213, 1
                  %s218 = sphi %s190, %s190
                  %s219 = sphi %s186, %s186
                $region50: #{stft_forward.1} parent=46 // loop_header_branch
                  %216 = sbr.rel (%p214) target = $region54
                $region51: #{stft_forward.1} parent=46 // loop_body
                  _
                $region52: #{stft_forward.1} parent=46 // loop_footer
                  %s217 = sadd.s32 1, %s213
                $region53: #{stft_forward.1} parent=46 // loop_footer_branch
                  %212 = sbr.rel target = $region49
                $region54: #{stft_forward.1} parent=46 // loop_exit
                  _
                loop: start=0, step=1, limit=1
                $region55: #{stft_forward.1} parent=46 // loop_pre_header
                  _
                $region56: #{stft_forward.1} parent=46 // loop_header
                  %s222 = sphi 0, %s226
                  %p223 = scmp.ge.s32.totalorder %s222, 1
                  %s227 = sphi %s190, %s190
                  %s228 = sphi %s186, %s186
                $region57: #{stft_forward.1} parent=46 // loop_header_branch
                  %225 = sbr.rel (%p223) target = $region61
                $region58: #{stft_forward.1} parent=46 // loop_body
                  %v229 = vld [vmem:[%s227] sm:$0xf]
                  %230 = vst [vmem:[%s228] sm:$0xf] %v229
                  %v231 = vld [vmem:[%s227 + $0x8] sm:$0xf]
                  %232 = vst [vmem:[%s228 + $0x4] sm:$0xf] %v231
                $region59: #{stft_forward.1} parent=46 // loop_footer
                  %s226 = sadd.s32 1, %s222
                $region60: #{stft_forward.1} parent=46 // loop_footer_branch
                  %221 = sbr.rel target = $region56
                $region61: #{stft_forward.1} parent=46 // loop_exit
                  _
              $region47: #{stft_forward.1} parent=31 // pred_fallthru
                _
            $region32: #{stft_forward.1} parent=27 // pred_fallthru
              _
            // Predicated region
            $region33: #{stft_forward.1} parent=27 // pred_check
              _
            $region34: #{stft_forward.1} parent=27 // pred_check_branch
              %196 = sbr.rel (0) target = $region36
            $region35: #{stft_forward.1} parent=27 // pred_region
              loop: start=0, step=1, limit=1
              $region37: #{stft_forward.1} parent=35 // loop_pre_header
                _
              $region38: #{stft_forward.1} parent=35 // loop_header
                %s199 = sphi 0, %s203
                %p200 = scmp.ge.s32.totalorder %s199, 1
                %s204 = sphi %s190, %s190
                %s205 = sphi %s186, %s186
              $region39: #{stft_forward.1} parent=35 // loop_header_branch
                %202 = sbr.rel (%p200) target = $region43
              $region40: #{stft_forward.1} parent=35 // loop_body
                %v206 = vld [vmem:[%s204] sm:$0xf]
                %207 = vst [vmem:[%s205] sm:$0xf] %v206
                %v208 = vld [vmem:[%s204 + $0x8] sm:$0xf]
                %209 = vst [vmem:[%s205 + $0x4] sm:$0xf] %v208
              $region41: #{stft_forward.1} parent=35 // loop_footer
                %s203 = sadd.s32 1, %s199
              $region42: #{stft_forward.1} parent=35 // loop_footer_branch
                %198 = sbr.rel target = $region38
              $region43: #{stft_forward.1} parent=35 // loop_exit
                _
            $region36: #{stft_forward.1} parent=27 // pred_fallthru
              _
          $region28: #{stft_forward.1} parent=23 // pred_fallthru
            _
          %233 = vnop
        $region24: #{stft_forward.1} parent=19 // pred_fallthru
          _
        // Predicated region
        $region62: #{stft_forward.1} parent=19 // pred_check
          %p234 = pneg %p96
        $region63: #{stft_forward.1} parent=19 // pred_check_branch
          %236 = sbr.rel (%p234) target = $region65
        $region64: #{stft_forward.1} parent=19 // pred_region
          %s237 = sand.u32 %s86, 1
          %s238 = sand.u32 %s86, 1
          %s239 = smul.addr %s238, 8
          %s240 = scalar_lea.vmem [#allocation3], %s239
          %s241 = sadd.s32 %s19, 1
          %s242 = smul.addr %s18, 4
          %s243 = sadd.s32 %s241, %s242
          %s244 = smul.addr %s243, 4
          %s245 = scalar_lea.vmem %s2, %s244
          // Predicated region
          $region66: #{stft_forward.1} parent=64 // pred_check
            _
          $region67: #{stft_forward.1} parent=64 // pred_check_branch
            %247 = sbr.rel (0) target = $region69
          $region68: #{stft_forward.1} parent=64 // pred_region
            // Predicated region
            $region70: #{stft_forward.1} parent=68 // pred_check
              _
            $region71: #{stft_forward.1} parent=68 // pred_check_branch
              %249 = sbr.rel target = $region73
            $region72: #{stft_forward.1} parent=68 // pred_region
              // Predicated region
              $region85: #{stft_forward.1} parent=72 // pred_check
                _
              $region86: #{stft_forward.1} parent=72 // pred_check_branch
                %266 = sbr.rel (0) target = $region88
              $region87: #{stft_forward.1} parent=72 // pred_region
                loop: start=0, step=1, limit=1
                $region89: #{stft_forward.1} parent=87 // loop_pre_header
                  _
                $region90: #{stft_forward.1} parent=87 // loop_header
                  %s268 = sphi 0, %s272
                  %p269 = scmp.ge.s32.totalorder %s268, 1
                  %s273 = sphi %s245, %s245
                  %s274 = sphi %s240, %s240
                $region91: #{stft_forward.1} parent=87 // loop_header_branch
                  %271 = sbr.rel (%p269) target = $region95
                $region92: #{stft_forward.1} parent=87 // loop_body
                  _
                $region93: #{stft_forward.1} parent=87 // loop_footer
                  %s272 = sadd.s32 1, %s268
                $region94: #{stft_forward.1} parent=87 // loop_footer_branch
                  %267 = sbr.rel target = $region90
                $region95: #{stft_forward.1} parent=87 // loop_exit
                  _
                loop: start=0, step=1, limit=1
                $region96: #{stft_forward.1} parent=87 // loop_pre_header
                  _
                $region97: #{stft_forward.1} parent=87 // loop_header
                  %s277 = sphi 0, %s281
                  %p278 = scmp.ge.s32.totalorder %s277, 1
                  %s282 = sphi %s245, %s245
                  %s283 = sphi %s240, %s240
                $region98: #{stft_forward.1} parent=87 // loop_header_branch
                  %280 = sbr.rel (%p278) target = $region102
                $region99: #{stft_forward.1} parent=87 // loop_body
                  %v284 = vld [vmem:[%s282] sm:$0xf]
                  %285 = vst [vmem:[%s283] sm:$0xf] %v284
                  %v286 = vld [vmem:[%s282 + $0x8] sm:$0xf]
                  %287 = vst [vmem:[%s283 + $0x4] sm:$0xf] %v286
                $region100: #{stft_forward.1} parent=87 // loop_footer
                  %s281 = sadd.s32 1, %s277
                $region101: #{stft_forward.1} parent=87 // loop_footer_branch
                  %276 = sbr.rel target = $region97
                $region102: #{stft_forward.1} parent=87 // loop_exit
                  _
              $region88: #{stft_forward.1} parent=72 // pred_fallthru
                _
            $region73: #{stft_forward.1} parent=68 // pred_fallthru
              _
            // Predicated region
            $region74: #{stft_forward.1} parent=68 // pred_check
              _
            $region75: #{stft_forward.1} parent=68 // pred_check_branch
              %251 = sbr.rel (0) target = $region77
            $region76: #{stft_forward.1} parent=68 // pred_region
              loop: start=0, step=1, limit=1
              $region78: #{stft_forward.1} parent=76 // loop_pre_header
                _
              $region79: #{stft_forward.1} parent=76 // loop_header
                %s254 = sphi 0, %s258
                %p255 = scmp.ge.s32.totalorder %s254, 1
                %s259 = sphi %s245, %s245
                %s260 = sphi %s240, %s240
              $region80: #{stft_forward.1} parent=76 // loop_header_branch
                %257 = sbr.rel (%p255) target = $region84
              $region81: #{stft_forward.1} parent=76 // loop_body
                %v261 = vld [vmem:[%s259] sm:$0xf]
                %262 = vst [vmem:[%s260] sm:$0xf] %v261
                %v263 = vld [vmem:[%s259 + $0x8] sm:$0xf]
                %264 = vst [vmem:[%s260 + $0x4] sm:$0xf] %v263
              $region82: #{stft_forward.1} parent=76 // loop_footer
                %s258 = sadd.s32 1, %s254
              $region83: #{stft_forward.1} parent=76 // loop_footer_branch
                %253 = sbr.rel target = $region79
              $region84: #{stft_forward.1} parent=76 // loop_exit
                _
            $region77: #{stft_forward.1} parent=68 // pred_fallthru
              _
          $region69: #{stft_forward.1} parent=64 // pred_fallthru
            _
          %288 = vnop
        $region65: #{stft_forward.1} parent=19 // pred_fallthru
          _
      $region20: #{stft_forward.1} parent=5 // pred_fallthru
        _
      %p289 = scmp.le.s32.totalorder 1, %s11
      %p290 = scmp.lt.s32.totalorder %s11, 3
      %p291 = pnand %p289, %p290
      %p292 = pneg %p291
      // Predicated region
      $region103: #{stft_forward.1} parent=5 // pred_check
        _
      $region104: #{stft_forward.1} parent=5 // pred_check_branch
        %294 = sbr.rel (%p291) target = $region106
      $region105: #{stft_forward.1} parent=5 // pred_region
        %s295 = ssub.s32 %s11, 1
        %s296 = sand.u32 %s59, 1
        %s297 = sand.u32 %s59, 1
        %s298 = smul.addr %s297, 8
        %s299 = scalar_lea.vmem [#allocation2], %s298
        // Predicated region
        $region107: #{stft_forward.1} parent=105 // pred_check
          %p300 = pneg %p72
        $region108: #{stft_forward.1} parent=105 // pred_check_branch
          %302 = sbr.rel (%p300) target = $region110
        $region109: #{stft_forward.1} parent=105 // pred_region
          _
        $region110: #{stft_forward.1} parent=105 // pred_fallthru
          _
        %s303 = sand.u32 %s89, 1
        %s304 = sand.u32 %s89, 1
        %s305 = smul.addr %s304, 8
        %s306 = scalar_lea.vmem [#allocation3], %s305
        // Predicated region
        $region111: #{stft_forward.1} parent=105 // pred_check
          %p307 = pneg %p102
        $region112: #{stft_forward.1} parent=105 // pred_check_branch
          %309 = sbr.rel (%p307) target = $region114
        $region113: #{stft_forward.1} parent=105 // pred_region
          _
        $region114: #{stft_forward.1} parent=105 // pred_fallthru
          _
        %p310 = pneg %p44
        %p311 = pneg %p41
        %s312 = sand.u32 %s59, 1
        %s313 = sand.u32 %s59, 1
        %s314 = smul.addr %s313, 8
        %s315 = scalar_lea.vmem [#allocation2], %s314
        %p316 = pneg %p72
        %p317 = pneg %p69
        %s318 = sand.u32 %s89, 1
        %s319 = sand.u32 %s89, 1
        %s320 = smul.addr %s319, 8
        %s321 = scalar_lea.vmem [#allocation3], %s320
        %p322 = pneg %p102
        %p323 = pneg %p99
        %p324 = pneg %p130
        %p325 = pneg %p127
        %p326 = scmp.lt.s32.totalorder %s20, 1
        %s327 = scalar_select %p326, %s20, 1
        %p328 = scmp.lt.s32.totalorder %s21, 0
        %s329 = scalar_select %p328, %s21, 0
        %s330 = smul.addr %s327, 2
        %s331 = sadd.s32 %s329, %s330
        %s332 = smul.addr %s331, 8
        %s333 = scalar_lea.vmem %s3, %s332
        %p334 = pneg %p158
        %p335 = pneg %p155
        %p336 = scmp.lt.s32.totalorder %s20, 1
        %s337 = scalar_select %p336, %s20, 1
        %p338 = scmp.lt.s32.totalorder %s21, 0
        %s339 = scalar_select %p338, %s21, 0
        %s340 = smul.addr %s337, 2
        %s341 = sadd.s32 %s339, %s340
        %s342 = smul.addr %s341, 8
        %s343 = scalar_lea.vmem %s4, %s342
        %s344 = sadd.s32 %s21, 1
        %p345 = scmp.lt.s32.totalorder %s20, 1
        %s346 = scalar_select %p345, %s20, 1
        %p347 = scmp.lt.s32.totalorder %s21, 0
        %s348 = scalar_select %p347, %s21, 0
        %s349 = smul.addr %s346, 2
        %s350 = sadd.s32 %s348, %s349
        %s351 = smul.addr %s350, 8
        %s352 = scalar_lea.vmem %s3, %s351
        %p353 = scmp.lt.s32.totalorder %s20, 1
        %s354 = scalar_select %p353, %s20, 1
        %p355 = scmp.lt.s32.totalorder %s21, 0
        %s356 = scalar_select %p355, %s21, 0
        %s357 = smul.addr %s354, 2
        %s358 = sadd.s32 %s356, %s357
        %s359 = smul.addr %s358, 8
        %s360 = scalar_lea.vmem %s4, %s359
        %v362 = vld [vmem:[%s299] sm:$0xf]
        %v363 = vld [vmem:[%s299 + $0x4] sm:$0xf]
        %v364 = vld [vmem:[%s306] sm:$0xf]
        %v365 = vld [vmem:[%s306 + $0x4] sm:$0xf]
        %v368 = vunpack.c.l.b16 %v362
        %v369 = vunpack.c.l.b16 %v363
        %v370 = vpack.c.b16 %v369, %v368
        %v374 = vunpack.c.l.b16 %v364
        %v375 = vunpack.c.l.b16 %v365
        %v376 = vpack.c.b16 %v375, %v374
        %v377 = vld [vmem:[%s0] sm:$0xf]
        %v378 = vld [vmem:[%s0 + $0x4] sm:$0xf]
        %v379 = vld [vmem:[%s0 + $0x8] sm:$0xf]
        %v380 = vld [vmem:[%s0 + $0xc] sm:$0xf]
        %v385 = vunpack.c.l.b16 %v377
        %v386 = vunpack.c.l.b16 %v378
        %v387 = vunpack.c.l.b16 %v379
        %v388 = vunpack.c.l.b16 %v380
        %v389 = vpack.c.b16 %v386, %v385
        %v390 = vpack.c.b16 %v388, %v387
        %vm391 = vcmask 130048
        %v393 = vsel %vm391, %v389, 0
        %v396 = vsel %vm391, %v390, 0
        %398 = vmatprep.subr.bf16.mxu0 0
        %399 = vmatpush1.bf16.msra.mxu0 %v370
        %400 = vmatprep.subr.bf16.mxu0 0
        %401 = vmatpush1.bf16.msra.mxu0 0
        %402 = vmatprep.subr.bf16.mxu0 0
        %403 = vmatpush1.bf16.msra.mxu0 0
        %404 = vmatprep.subr.bf16.mxu0 0
        %405 = vmatpush1.bf16.msra.mxu0 0
        %406 = vmatprep.subr.bf16.mxu0 0
        %407 = vmatpush1.bf16.msra.mxu0 0
        %408 = vmatprep.subr.bf16.mxu0 0
        %409 = vmatpush1.bf16.msra.mxu0 0
        %410 = vmatprep.subr.bf16.mxu0 0
        %411 = vmatpush1.bf16.msra.mxu0 0
        %412 = vmatprep.subr.bf16.mxu0 0
        %413 = vmatpush1.bf16.msra.mxu0 0
        %414 = vmatprep.subr.bf16.mxu0 0
        %415 = vmatpush1.bf16.msra.mxu0 0
        %416 = vmatprep.subr.bf16.mxu0 0
        %417 = vmatpush1.bf16.msra.mxu0 0
        %418 = vmatprep.subr.bf16.mxu0 0
        %419 = vmatpush1.bf16.msra.mxu0 0
        %420 = vmatprep.subr.bf16.mxu0 0
        %421 = vmatpush1.bf16.msra.mxu0 0
        %422 = vmatprep.subr.bf16.mxu0 0
        %423 = vmatpush1.bf16.msra.mxu0 0
        %424 = vmatprep.subr.bf16.mxu0 0
        %425 = vmatpush1.bf16.msra.mxu0 0
        %426 = vmatprep.subr.bf16.mxu0 0
        %427 = vmatpush1.bf16.msra.mxu0 0
        %428 = vmatprep.subr.bf16.mxu0 0
        %429 = vmatpush1.bf16.msra.mxu0 0
        %430 = vmatprep.mubr.bf16.mxu0 0
        %431 = vmatmul.mubr.bf16.gmra.mrb[0].mxu0 %v393
        %v432 = vpop.f32.mrb[0].mxu0
        %v433 = vadd.f32 1e-08, %v432
        %v434 = vpop.f32.mrb[0].mxu0
        %v435 = vpop.f32.mrb[0].mxu0
        %v436 = vadd.f32 1e-08, %v435
        %v437 = vpop.f32.mrb[0].mxu0
        %438 = vmatprep.mubr.bf16.mxu0 0
        %439 = vmatmul.mubr.bf16.gmra.mrb[0].mxu0 %v396
        %v440 = vpop.f32.mrb[0].mxu0
        %v441 = vadd.f32 1e-08, %v440
        %v442 = vpop.f32.mrb[0].mxu0
        %v443 = vpop.f32.mrb[0].mxu0
        %v444 = vadd.f32 1e-08, %v443
        %v445 = vpop.f32.mrb[0].mxu0
        %446 = vdwg.mxu0
        %s447 = scalar_lea.vmem %s0, 16
        %v448 = vld [vmem:[%s447] sm:$0xf]
        %v449 = vld [vmem:[%s447 + $0x4] sm:$0xf]
        %v450 = vld [vmem:[%s447 + $0x8] sm:$0xf]
        %v451 = vld [vmem:[%s447 + $0xc] sm:$0xf]
        %v456 = vunpack.c.l.b16 %v448
        %v457 = vunpack.c.l.b16 %v449
        %v458 = vunpack.c.l.b16 %v450
        %v459 = vunpack.c.l.b16 %v451
        %v460 = vpack.c.b16 %v457, %v456
        %v461 = vpack.c.b16 %v459, %v458
        %462 = vrot.lane.b32.xlu0 %v370, 127
        %v463 = vpop.permute.xlu0 %462
        %464 = vrot.lane.b32.xlu0 %v376, 127
        %v465 = vpop.permute.xlu0 %464
        %vm466 = vcmask 1039360
        %v467 = vsel %vm466, %v463, %v465
        %v470 = vsel %vm391, %v460, 0
        %v473 = vsel %vm391, %v461, 0
        %475 = vmatprep.subr.bf16.mxu0 0
        %476 = vmatpush1.bf16.msra.mxu0 %v467
        %477 = vmatprep.subr.bf16.mxu0 0
        %478 = vmatpush1.bf16.msra.mxu0 0
        %479 = vmatprep.subr.bf16.mxu0 0
        %480 = vmatpush1.bf16.msra.mxu0 0
        %481 = vmatprep.subr.bf16.mxu0 0
        %482 = vmatpush1.bf16.msra.mxu0 0
        %483 = vmatprep.subr.bf16.mxu0 0
        %484 = vmatpush1.bf16.msra.mxu0 0
        %485 = vmatprep.subr.bf16.mxu0 0
        %486 = vmatpush1.bf16.msra.mxu0 0
        %487 = vmatprep.subr.bf16.mxu0 0
        %488 = vmatpush1.bf16.msra.mxu0 0
        %489 = vmatprep.subr.bf16.mxu0 0
        %490 = vmatpush1.bf16.msra.mxu0 0
        %491 = vmatprep.subr.bf16.mxu0 0
        %492 = vmatpush1.bf16.msra.mxu0 0
        %493 = vmatprep.subr.bf16.mxu0 0
        %494 = vmatpush1.bf16.msra.mxu0 0
        %495 = vmatprep.subr.bf16.mxu0 0
        %496 = vmatpush1.bf16.msra.mxu0 0
        %497 = vmatprep.subr.bf16.mxu0 0
        %498 = vmatpush1.bf16.msra.mxu0 0
        %499 = vmatprep.subr.bf16.mxu0 0
        %500 = vmatpush1.bf16.msra.mxu0 0
        %501 = vmatprep.subr.bf16.mxu0 0
        %502 = vmatpush1.bf16.msra.mxu0 0
        %503 = vmatprep.subr.bf16.mxu0 0
        %504 = vmatpush1.bf16.msra.mxu0 0
        %505 = vmatprep.subr.bf16.mxu0 0
        %506 = vmatpush1.bf16.msra.mxu0 0
        %507 = vmatprep.mubr.bf16.mxu0 0
        %508 = vmatmul.mubr.bf16.gmra.mrb[0].mxu0 %v470
        %v509 = vpop.f32.mrb[0].mxu0
        %v510 = vadd.f32 0.0, %v509
        %v511 = vpop.f32.mrb[0].mxu0
        %v512 = vpop.f32.mrb[0].mxu0
        %v513 = vadd.f32 0.0, %v512
        %v514 = vpop.f32.mrb[0].mxu0
        %515 = vmatprep.mubr.bf16.mxu0 0
        %516 = vmatmul.mubr.bf16.gmra.mrb[0].mxu0 %v473
        %v517 = vpop.f32.mrb[0].mxu0
        %v518 = vadd.f32 0.0, %v517
        %v519 = vpop.f32.mrb[0].mxu0
        %v520 = vpop.f32.mrb[0].mxu0
        %v521 = vadd.f32 0.0, %v520
        %v522 = vpop.f32.mrb[0].mxu0
        %523 = vdwg.mxu0
        %v524 = vadd.f32 %v433, %v510
        %v525 = vadd.f32 %v436, %v513
        %v526 = vadd.f32 %v441, %v518
        %v527 = vadd.f32 %v444, %v521
        %s528 = scalar_lea.vmem %s0, 32
        %v529 = vld [vmem:[%s528] sm:$0xf]
        %v530 = vld [vmem:[%s528 + $0x4] sm:$0xf]
        %v531 = vld [vmem:[%s528 + $0x8] sm:$0xf]
        %v532 = vld [vmem:[%s528 + $0xc] sm:$0xf]
        %v537 = vunpack.c.l.b16 %v529
        %v538 = vunpack.c.l.b16 %v530
        %v539 = vunpack.c.l.b16 %v531
        %v540 = vunpack.c.l.b16 %v532
        %v541 = vpack.c.b16 %v538, %v537
        %v542 = vpack.c.b16 %v540, %v539
        %543 = vrot.lane.b32.xlu0 %v370, 126
        %v544 = vpop.permute.xlu0 %543
        %545 = vrot.lane.b32.xlu0 %v376, 126
        %v546 = vpop.permute.xlu0 %545
        %vm547 = vcmask 1031168
        %v548 = vsel %vm547, %v544, %v546
        %v551 = vsel %vm391, %v541, 0
        %v554 = vsel %vm391, %v542, 0
        %556 = vmatprep.subr.bf16.mxu0 0
        %557 = vmatpush1.bf16.msra.mxu0 %v548
        %558 = vmatprep.subr.bf16.mxu0 0
        %559 = vmatpush1.bf16.msra.mxu0 0
        %560 = vmatprep.subr.bf16.mxu0 0
        %561 = vmatpush1.bf16.msra.mxu0 0
        %562 = vmatprep.subr.bf16.mxu0 0
        %563 = vmatpush1.bf16.msra.mxu0 0
        %564 = vmatprep.subr.bf16.mxu0 0
        %565 = vmatpush1.bf16.msra.mxu0 0
        %566 = vmatprep.subr.bf16.mxu0 0
        %567 = vmatpush1.bf16.msra.mxu0 0
        %568 = vmatprep.subr.bf16.mxu0 0
        %569 = vmatpush1.bf16.msra.mxu0 0
        %570 = vmatprep.subr.bf16.mxu0 0
        %571 = vmatpush1.bf16.msra.mxu0 0
        %572 = vmatprep.subr.bf16.mxu0 0
        %573 = vmatpush1.bf16.msra.mxu0 0
        %574 = vmatprep.subr.bf16.mxu0 0
        %575 = vmatpush1.bf16.msra.mxu0 0
        %576 = vmatprep.subr.bf16.mxu0 0
        %577 = vmatpush1.bf16.msra.mxu0 0
        %578 = vmatprep.subr.bf16.mxu0 0
        %579 = vmatpush1.bf16.msra.mxu0 0
        %580 = vmatprep.subr.bf16.mxu0 0
        %581 = vmatpush1.bf16.msra.mxu0 0
        %582 = vmatprep.subr.bf16.mxu0 0
        %583 = vmatpush1.bf16.msra.mxu0 0
        %584 = vmatprep.subr.bf16.mxu0 0
        %585 = vmatpush1.bf16.msra.mxu0 0
        %586 = vmatprep.subr.bf16.mxu0 0
        %587 = vmatpush1.bf16.msra.mxu0 0
        %588 = vmatprep.mubr.bf16.mxu0 0
        %589 = vmatmul.mubr.bf16.gmra.mrb[0].mxu0 %v551
        %v590 = vpop.f32.mrb[0].mxu0
        %v591 = vadd.f32 0.0, %v590
        %v592 = vpop.f32.mrb[0].mxu0
        %v593 = vpop.f32.mrb[0].mxu0
        %v594 = vadd.f32 0.0, %v593
        %v595 = vpop.f32.mrb[0].mxu0
        %596 = vmatprep.mubr.bf16.mxu0 0
        %597 = vmatmul.mubr.bf16.gmra.mrb[0].mxu0 %v554
        %v598 = vpop.f32.mrb[0].mxu0
        %v599 = vadd.f32 0.0, %v598
        %v600 = vpop.f32.mrb[0].mxu0
        %v601 = vpop.f32.mrb[0].mxu0
        %v602 = vadd.f32 0.0, %v601
        %v603 = vpop.f32.mrb[0].mxu0
        %604 = vdwg.mxu0
        %v605 = vadd.f32 %v524, %v591
        %v606 = vadd.f32 %v525, %v594
        %v607 = vadd.f32 %v526, %v599
        %v608 = vadd.f32 %v527, %v602
        %s609 = scalar_lea.vmem %s0, 48
        %v610 = vld [vmem:[%s609] sm:$0xf]
        %v611 = vld [vmem:[%s609 + $0x4] sm:$0xf]
        %v612 = vld [vmem:[%s609 + $0x8] sm:$0xf]
        %v613 = vld [vmem:[%s609 + $0xc] sm:$0xf]
        %v618 = vunpack.c.l.b16 %v610
        %v619 = vunpack.c.l.b16 %v611
        %v620 = vunpack.c.l.b16 %v612
        %v621 = vunpack.c.l.b16 %v613
        %v622 = vpack.c.b16 %v619, %v618
        %v623 = vpack.c.b16 %v621, %v620
        %624 = vrot.lane.b32.xlu0 %v370, 125
        %v625 = vpop.permute.xlu0 %624
        %626 = vrot.lane.b32.xlu0 %v376, 125
        %v627 = vpop.permute.xlu0 %626
        %vm628 = vcmask 1022976
        %v629 = vsel %vm628, %v625, %v627
        %v632 = vsel %vm391, %v622, 0
        %v635 = vsel %vm391, %v623, 0
        %637 = vmatprep.subr.bf16.mxu0 0
        %638 = vmatpush1.bf16.msra.mxu0 %v629
        %639 = vmatprep.subr.bf16.mxu0 0
        %640 = vmatpush1.bf16.msra.mxu0 0
        %641 = vmatprep.subr.bf16.mxu0 0
        %642 = vmatpush1.bf16.msra.mxu0 0
        %643 = vmatprep.subr.bf16.mxu0 0
        %644 = vmatpush1.bf16.msra.mxu0 0
        %645 = vmatprep.subr.bf16.mxu0 0
        %646 = vmatpush1.bf16.msra.mxu0 0
        %647 = vmatprep.subr.bf16.mxu0 0
        %648 = vmatpush1.bf16.msra.mxu0 0
        %649 = vmatprep.subr.bf16.mxu0 0
        %650 = vmatpush1.bf16.msra.mxu0 0
        %651 = vmatprep.subr.bf16.mxu0 0
        %652 = vmatpush1.bf16.msra.mxu0 0
        %653 = vmatprep.subr.bf16.mxu0 0
        %654 = vmatpush1.bf16.msra.mxu0 0
        %655 = vmatprep.subr.bf16.mxu0 0
        %656 = vmatpush1.bf16.msra.mxu0 0
        %657 = vmatprep.subr.bf16.mxu0 0
        %658 = vmatpush1.bf16.msra.mxu0 0
        %659 = vmatprep.subr.bf16.mxu0 0
        %660 = vmatpush1.bf16.msra.mxu0 0
        %661 = vmatprep.subr.bf16.mxu0 0
        %662 = vmatpush1.bf16.msra.mxu0 0
        %663 = vmatprep.subr.bf16.mxu0 0
        %664 = vmatpush1.bf16.msra.mxu0 0
        %665 = vmatprep.subr.bf16.mxu0 0
        %666 = vmatpush1.bf16.msra.mxu0 0
        %667 = vmatprep.subr.bf16.mxu0 0
        %668 = vmatpush1.bf16.msra.mxu0 0
        %669 = vmatprep.mubr.bf16.mxu0 0
        %670 = vmatmul.mubr.bf16.gmra.mrb[0].mxu0 %v632
        %v671 = vpop.f32.mrb[0].mxu0
        %v672 = vadd.f32 0.0, %v671
        %v673 = vpop.f32.mrb[0].mxu0
        %v674 = vpop.f32.mrb[0].mxu0
        %v675 = vadd.f32 0.0, %v674
        %v676 = vpop.f32.mrb[0].mxu0
        %677 = vmatprep.mubr.bf16.mxu0 0
        %678 = vmatmul.mubr.bf16.gmra.mrb[0].mxu0 %v635
        %v679 = vpop.f32.mrb[0].mxu0
        %v680 = vadd.f32 0.0, %v679
        %v681 = vpop.f32.mrb[0].mxu0
        %v682 = vpop.f32.mrb[0].mxu0
        %v683 = vadd.f32 0.0, %v682
        %v684 = vpop.f32.mrb[0].mxu0
        %685 = vdwg.mxu0
        %v686 = vadd.f32 %v605, %v672
        %v687 = vadd.f32 %v606, %v675
        %v688 = vadd.f32 %v607, %v680
        %v689 = vadd.f32 %v608, %v683
        %v690 = vmul.f32 %v686, %v686
        %v691 = vmul.f32 %v687, %v687
        %v692 = vmul.f32 %v688, %v688
        %v693 = vmul.f32 %v689, %v689
        %v694 = vadd.f32 %v690, %v692
        %v695 = vadd.f32 %v691, %v693
        %v696 = vrsqrt.pop %v694
        %v697 = vmul.f32 %v694, %v696
        %vm698 = vcmp.eq.f32.partialorder %v694, inf
        %v699 = vsel %vm698, %v694, %v697
        %vm700 = vcmp.eq.f32.partialorder %v694, 0.0
        %v701 = vand.u32 %v694, 2147483648
        %v702 = vsel %vm700, %v701, %v699
        %v703 = vrsqrt.pop %v695
        %v704 = vmul.f32 %v695, %v703
        %vm705 = vcmp.eq.f32.partialorder %v695, inf
        %v706 = vsel %vm705, %v695, %v704
        %vm707 = vcmp.eq.f32.partialorder %v695, 0.0
        %v708 = vand.u32 %v695, 2147483648
        %v709 = vsel %vm707, %v708, %v706
        %710 = vst [vmem:[%s360] sm:$0xff] %v702
        %711 = vst [vmem:[%s360 + $0x8] sm:$0xff] %v709
        %v712 = vand.u32 2147483647, %v686
        %v713 = vand.u32 2147483647, %v687
        %v714 = vand.u32 2147483647, %v688
        %v715 = vand.u32 2147483647, %v689
        %v716 = vmax.f32 %v712, %v714
        %v717 = vmax.f32 %v713, %v715
        %v718 = vmin.f32 %v712, %v714
        %v719 = vmin.f32 %v713, %v715
        %v720 = vmax.f32 %v716, 1e-30
        %v721 = vmax.f32 %v717, 1e-30
        %v722 = vrcp.pop %v720
        %v723 = vrcp.pop %v721
        %v724 = vmul.f32 %v718, %v722
        %v725 = vmul.f32 %v719, %v723
        %vm726 = vcmp.gt.f32.partialorder %v724, 0.41421357
        %vm727 = vcmp.gt.f32.partialorder %v725, 0.41421357
        %v728 = vsub.f32 %v724, 1.0
        %v729 = vsub.f32 %v725, 1.0
        %v730 = vadd.f32 %v724, 1.0
        %v731 = vadd.f32 %v725, 1.0
        %v732 = vrcp.pop %v730
        %v733 = vrcp.pop %v731
        %v734 = vmul.f32 %v728, %v732
        %v735 = vmul.f32 %v729, %v733
        %v736 = vsel %vm726, %v734, %v724
        %v737 = vsel %vm727, %v735, %v725
        %v738 = vmul.f32 %v736, %v736
        %v739 = vmul.f32 %v737, %v737
        %v740 = vmul.f32 %v738, 0.080537446
        %v741 = vmul.f32 %v739, 0.080537446
        %v742 = vsub.f32 %v740, 0.13877685
        %v743 = vsub.f32 %v741, 0.13877685
        %v744 = vmul.f32 %v742, %v738
        %v745 = vmul.f32 %v743, %v739
        %v746 = vadd.f32 %v744, 0.19977711
        %v747 = vadd.f32 %v745, 0.19977711
        %v748 = vmul.f32 %v746, %v738
        %v749 = vmul.f32 %v747, %v739
        %v750 = vsub.f32 %v748, 0.3333295
        %v751 = vsub.f32 %v749, 0.3333295
        %v752 = vmul.f32 %v750, %v738
        %v753 = vmul.f32 %v751, %v739
        %v754 = vmul.f32 %v752, %v736
        %v755 = vmul.f32 %v753, %v737
        %v756 = vadd.f32 %v754, %v736
        %v757 = vadd.f32 %v755, %v737
        %v758 = vadd.f32 %v756, 0.7853982
        %v759 = vadd.f32 %v757, 0.7853982
        %v760 = vsel %vm726, %v758, %v756
        %v761 = vsel %vm727, %v759, %v757
        %vm762 = vcmp.gt.f32.partialorder %v714, %v712
        %vm763 = vcmp.gt.f32.partialorder %v715, %v713
        %v764 = vsub.f32 1.5707964, %v760
        %v765 = vsub.f32 1.5707964, %v761
        %v766 = vsel %vm762, %v764, %v760
        %v767 = vsel %vm763, %v765, %v761
        %vm768 = vcmp.lt.f32.partialorder %v686, 0.0
        %vm769 = vcmp.lt.f32.partialorder %v687, 0.0
        %v770 = vsub.f32 3.1415927, %v766
        %v771 = vsub.f32 3.1415927, %v767
        %v772 = vsel %vm768, %v770, %v766
        %v773 = vsel %vm769, %v771, %v767
        %v776 = vand.u32 %v688, 2147483648
        %v777 = vand.u32 %v689, 2147483648
        %v780 = vxor.u32 %v772, %v776
        %v781 = vxor.u32 %v773, %v777
        %784 = vst [vmem:[%s352] sm:$0xff] %v780
        %785 = vst [vmem:[%s352 + $0x8] sm:$0xff] %v781
        %p786 = scmp.lt.s32.totalorder %s20, 1
        %s787 = scalar_select %p786, %s20, 1
        %p788 = scmp.lt.s32.totalorder %s21, 0
        %s789 = scalar_select %p788, %s21, 0
        %s790 = smul.addr %s787, 2
        %s791 = sadd.s32 %s789, %s790
        %s792 = smul.addr %s791, 8
        %s793 = scalar_lea.vmem %s3, %s792
        %p794 = scmp.lt.s32.totalorder %s20, 1
        %s795 = scalar_select %p794, %s20, 1
        %p796 = scmp.lt.s32.totalorder %s21, 0
        %s797 = scalar_select %p796, %s21, 0
        %s798 = smul.addr %s795, 2
        %s799 = sadd.s32 %s797, %s798
        %s800 = smul.addr %s799, 8
        %s801 = scalar_lea.vmem %s4, %s800
        // Predicated region
        $region115: #{stft_forward.1} parent=105 // pred_check
          %p802 = pneg %p127
        $region116: #{stft_forward.1} parent=105 // pred_check_branch
          %804 = sbr.rel (%p802) target = $region118
        $region117: #{stft_forward.1} parent=105 // pred_region
          _
        $region118: #{stft_forward.1} parent=105 // pred_fallthru
          _
        // Predicated region
        $region119: #{stft_forward.1} parent=105 // pred_check
          %p805 = pneg %p155
        $region120: #{stft_forward.1} parent=105 // pred_check_branch
          %807 = sbr.rel (%p805) target = $region122
        $region121: #{stft_forward.1} parent=105 // pred_region
          _
        $region122: #{stft_forward.1} parent=105 // pred_fallthru
          _
      $region106: #{stft_forward.1} parent=5 // pred_fallthru
        _
      %p808 = scmp.le.s32.totalorder 2, %s11
      // Predicated region
      $region123: #{stft_forward.1} parent=5 // pred_check
        %p809 = pneg %p808
      $region124: #{stft_forward.1} parent=5 // pred_check_branch
        %811 = sbr.rel (%p809) target = $region126
      $region125: #{stft_forward.1} parent=5 // pred_region
        %s812 = ssub.s32 %s11, 2
        // Predicated region
        $region127: #{stft_forward.1} parent=125 // pred_check
          %p813 = pneg %p133
        $region128: #{stft_forward.1} parent=125 // pred_check_branch
          %815 = sbr.rel (%p813) target = $region130
        $region129: #{stft_forward.1} parent=125 // pred_region
          %p816 = scmp.lt.s32.totalorder %s22, 1
          %s817 = scalar_select %p816, %s22, 1
          %p818 = scmp.lt.s32.totalorder %s23, 0
          %s819 = scalar_select %p818, %s23, 0
          %s820 = smul.addr %s817, 2
          %s821 = sadd.s32 %s819, %s820
          %s822 = smul.addr %s821, 8
          %s823 = scalar_lea.vmem %s3, %s822
        $region130: #{stft_forward.1} parent=125 // pred_fallthru
          _
        // Predicated region
        $region131: #{stft_forward.1} parent=125 // pred_check
          %p824 = pneg %p161
        $region132: #{stft_forward.1} parent=125 // pred_check_branch
          %826 = sbr.rel (%p824) target = $region134
        $region133: #{stft_forward.1} parent=125 // pred_region
          %p827 = scmp.lt.s32.totalorder %s22, 1
          %s828 = scalar_select %p827, %s22, 1
          %p829 = scmp.lt.s32.totalorder %s23, 0
          %s830 = scalar_select %p829, %s23, 0
          %s831 = smul.addr %s828, 2
          %s832 = sadd.s32 %s830, %s831
          %s833 = smul.addr %s832, 8
          %s834 = scalar_lea.vmem %s4, %s833
        $region134: #{stft_forward.1} parent=125 // pred_fallthru
          _
      $region126: #{stft_forward.1} parent=5 // pred_fallthru
        _
    $region6: #{stft_forward.1} parent=1 // loop_footer
      %s15 = sadd.s32 1, %s11
    $region7: #{stft_forward.1} parent=1 // loop_footer_branch
      %10 = sbr.rel target = $region3
    $region8: #{stft_forward.1} parent=1 // loop_exit
      _

</llo_original>
